<compile_context>
chip_gen: v6e
topology: v6e:2x2x1
jax: 0.10.0
libtpu: 0.0.40
codegen_flags: <defaults>
</compile_context>

<pallas_src>
import functools

import jax
import jax.numpy as jnp
from jax.experimental import pallas as pl
from jax.experimental.pallas import tpu as pltpu

LANES = 128
SUBLANES = 8
ROWGROUP = SUBLANES * LANES            # 1024 elements: kernel-main granularity
TILE_BYTES = 4 * 1024 * 1024           # per-input per-grid-step block target
CHUNK_ROWS = 2048                      # in-kernel fold strip (~1 MiB f32 temps)
ACC_ROWS = 64                          # accumulator rows (8 vregs -> 8 chains)
VMEM_LIMIT = 40 * 1024 * 1024


def _cdiv(a, b):
    return -(-a // b)


def _round_up(a, b):
    return _cdiv(a, b) * b


@functools.lru_cache(maxsize=1)
def _num_tensorcores():
    """TensorCores per device: 2 on megacore chips (v4/v5p/v7x), else 1."""
    try:
        info = pltpu.get_tpu_info()
        for attr in ("num_cores", "core_count", "num_tensorcores",
                     "tensor_core_count"):
            v = getattr(info, attr, None)
            if isinstance(v, int) and v > 0:
                return v
    except Exception:
        pass
    try:
        kind = jax.devices()[0].device_kind.lower()
        if any(tag in kind for tag in ("v4", "v5p", "v7")):
            return 2
    except Exception:
        pass
    return 1


def _make_l1_sum_kernel(tile_rows, acc_rows, tiles_per_core, valid_rows,
                        first_edge_tile, needs_mask):
    """Build the per-grid-step kernel; all arguments are static ints/bools."""
    full_chunks = tile_rows // CHUNK_ROWS
    rem_rows = tile_rows - full_chunks * CHUNK_ROWS

    def kernel(y_ref, x_ref, o_ref):
        t = pl.program_id(1)                                   # tile in core
        tile = pl.program_id(0) * tiles_per_core + t           # global tile

        @pl.when(t == 0)
        def _():
            o_ref[...] = jnp.zeros_like(o_ref)

        def chunk_sum(r0, nrows, masked):
            # (nrows,128) strip of the resident VMEM block -> (acc_rows,128).
            y = y_ref[pl.ds(r0, nrows), :].astype(jnp.float32)
            x = x_ref[pl.ds(r0, nrows), :].astype(jnp.float32)
            # (x - (-5)) / (0 - (-5)) * 2 - 1  ==  x * 0.4 + 1 (folded consts)
            d = jnp.abs(y - (x * 0.4 + 1.0))
            if masked:
                # Row-only compare: no flat index, no int32 overflow; zeroes
                # rows past the end of the slab in edge / clamped tiles.
                row = (tile * tile_rows + r0 +
                       jax.lax.broadcasted_iota(jnp.int32, (nrows, LANES), 0))
                d = jnp.where(row < valid_rows, d, 0.0)
            # (8,128)-aligned fold: acc_rows/8 independent vector add chains,
            # no XLU / cross-lane work.
            return d.reshape(nrows // acc_rows, acc_rows, LANES).sum(axis=0)

        def fold_tile(masked):
            acc = o_ref[...]
            if full_chunks:
                acc = jax.lax.fori_loop(
                    0, full_chunks,
                    lambda k, a: a + chunk_sum(
                        pl.multiple_of(k * CHUNK_ROWS, CHUNK_ROWS),
                        CHUNK_ROWS, masked),
                    acc)
            if rem_rows:
                acc = acc + chunk_sum(full_chunks * CHUNK_ROWS, rem_rows, masked)
            o_ref[...] = acc

        if needs_mask:
            # Fast path for fully-valid interior tiles; only the edge (and any
            # clamped over-provisioned) tiles pay for the iota + select.
            @pl.when(tile < first_edge_tile)
            def _():
                fold_tile(False)

            @pl.when(tile >= first_edge_tile)
            def _():
                fold_tile(True)
        else:
            fold_tile(False)

    return kernel


def fs2_loss_pallas(y, x):
    """Scalar L1 loss between y and min-max-normalized x (fs2_loss.forward)."""
    assert y.shape == x.shape, (y.shape, x.shape)
    n_elems = y.size
    y_flat = jnp.ravel(y)
    x_flat = jnp.ravel(x)

    # The kernel streams whole (8,128) row-groups; the <=1023-element remainder
    # is folded in with a tiny plain-JAX epilogue (no full-array pad / concat).
    main = (n_elems // ROWGROUP) * ROWGROUP
    tail = n_elems - main

    loss_sum = jnp.float32(0.0)

    if main:
        rows = main // LANES                       # multiple of 8
        if tail:
            # Ragged sizes pay one prefix slice; typical mel targets here are
            # (B, T, 128) so this path is rarely taken.
            y_main, x_main = y_flat[:main], x_flat[:main]
        else:
            y_main, x_main = y_flat, x_flat        # pure reshape, no copy
        y2 = y_main.reshape(rows, LANES)
        x2 = x_main.reshape(rows, LANES)

        itemsize = max(jnp.dtype(y.dtype).itemsize, jnp.dtype(x.dtype).itemsize)
        cap = max(SUBLANES,
                  (TILE_BYTES // (LANES * itemsize)) // SUBLANES * SUBLANES)

        if rows <= cap:
            # Single block: no core split, no masking needed.
            ncores, tiles_per_core, tile_rows = 1, 1, rows
        else:
            # Split (nearly) evenly across TensorCores / grid steps so no whole
            # tile is a clamped re-read; cap is a multiple of 64 for 1/2/4/8 B.
            ncores = _num_tensorcores()
            tiles_per_core = _cdiv(rows, ncores * cap)
            tile_rows = min(cap, _round_up(_cdiv(rows, ncores * tiles_per_core),
                                           ACC_ROWS))

        acc_rows = ACC_ROWS
        while tile_rows % acc_rows:                # tile_rows is a multiple of 8
            acc_rows //= 2

        coverage = ncores * tiles_per_core * tile_rows
        needs_mask = coverage != rows
        first_edge_tile = rows // tile_rows        # first tile with invalid rows
        last_block = _cdiv(rows, tile_rows) - 1

        def in_map(c, t):
            # Clamp (rarely) over-provisioned steps onto the last valid block;
            # their contribution is zeroed by the in-kernel row mask.
            return (jnp.minimum(c * tiles_per_core + t, last_block), 0)

        kernel = _make_l1_sum_kernel(tile_rows, acc_rows, tiles_per_core, rows,
                                     first_edge_tile, needs_mask)

        bytes_accessed = main * (jnp.dtype(y.dtype).itemsize
                                 + jnp.dtype(x.dtype).itemsize)
        bytes_accessed += ncores * acc_rows * LANES * 4

        partials = pl.pallas_call(
            kernel,
            out_shape=jax.ShapeDtypeStruct((ncores, acc_rows, LANES),
                                           jnp.float32),
            grid_spec=pltpu.PrefetchScalarGridSpec(
                num_scalar_prefetch=0,
                grid=(ncores, tiles_per_core),
                in_specs=[
                    pl.BlockSpec((tile_rows, LANES), in_map),
                    pl.BlockSpec((tile_rows, LANES), in_map),
                ],
                # lane-dense per-core partial, revisited across the tile axis
                out_specs=pl.BlockSpec((None, acc_rows, LANES),
                                       lambda c, t: (c, 0, 0)),
            ),
            compiler_params=pltpu.CompilerParams(
                dimension_semantics=("parallel", "arbitrary"),
                vmem_limit_bytes=VMEM_LIMIT,
            ),
            cost_estimate=pl.CostEstimate(
                flops=6 * main,
                transcendentals=0,
                bytes_accessed=int(bytes_accessed)),
        )(y2, x2)

        loss_sum = loss_sum + jnp.sum(partials)

    if tail:
        # <=1023-element remainder: trivial plain-JAX fold.
        yt = y_flat[main:].astype(jnp.float32)
        xt = x_flat[main:].astype(jnp.float32)
        loss_sum = loss_sum + jnp.sum(jnp.abs(yt - (xt * 0.4 + 1.0)))

    return (loss_sum / jnp.float32(n_elems)).astype(jnp.float32)


def fs2_loss_ref(y, x):
    x_norm = (x - (-5.0)) / (0.0 - (-5.0)) * 2.0 - 1.0
    return jnp.mean(jnp.abs(y - x_norm))


if __name__ == "__main__":
    # Primary check: small mel-like shape (B, T, out_dims=128), f32, aligned
    # (single block, fast path).
    ky, kx = jax.random.split(jax.random.PRNGKey(0))
    shape = (2, 8, 128)
    y = jax.random.normal(ky, shape, dtype=jnp.float32)
    x = jax.random.uniform(kx, shape, dtype=jnp.float32, minval=-5.0, maxval=0.0)
    loss = fs2_loss_pallas(y, x)
    jax.block_until_ready(loss)
    ref = fs2_loss_ref(y, x)
    assert jnp.allclose(loss, ref, rtol=1e-5, atol=1e-6), (loss, ref)

    # Ragged-size check: exercises the prefix slice + plain-JAX tail epilogue.
    k1, k2 = jax.random.split(jax.random.PRNGKey(1))
    shape2 = (3, 5, 7, 11)
    y2 = jax.random.normal(k1, shape2, dtype=jnp.float32)
    x2 = jax.random.uniform(k2, shape2, dtype=jnp.float32, minval=-5.0, maxval=0.0)
    l2 = fs2_loss_pallas(y2, x2)
    jax.block_until_ready(l2)
    assert jnp.allclose(l2, fs2_loss_ref(y2, x2), rtol=1e-5, atol=1e-6), l2

    # Multi-tile check: more than one 4 MiB block, in-kernel chunk loop plus
    # remainder chunk, masked edge tile, bf16 inputs cast to f32 in-kernel.
    k3, k4 = jax.random.split(jax.random.PRNGKey(2))
    shape3 = (4, 4100, 128)
    y3 = jax.random.normal(k3, shape3, dtype=jnp.bfloat16)
    x3 = jax.random.uniform(k4, shape3, dtype=jnp.bfloat16, minval=-5.0, maxval=0.0)
    l3 = fs2_loss_pallas(y3, x3)
    jax.block_until_ready(l3)
    ref3 = fs2_loss_ref(y3.astype(jnp.float32), x3.astype(jnp.float32))
    assert jnp.allclose(l3, ref3, rtol=1e-4, atol=1e-5), (l3, ref3)

    print("KERNEL_OK")
</pallas_src>

<mosaic_0001>
module attributes {stable_mosaic.version = 11 : i64} {
  func.func @kernel(%arg0: i32, %arg1: i32, %arg2: memref<16x128xf32, #tpu.memory_space<vmem>>, %arg3: memref<16x128xf32, #tpu.memory_space<vmem>>, %arg4: memref<1x16x128xf32, #tpu.memory_space<vmem>>) attributes {dimension_semantics = [#tpu.dimension_semantics<parallel>, #tpu.dimension_semantics<arbitrary>], iteration_bounds = array<i64: 1, 1>, scalar_prefetch = 0 : i64, scratch_operands = 0 : i64, tpu.core_type = #tpu.core_type<tc>, window_params = [{transform_indices = @transform_0, window_bounds = array<i64: 16, 128>}, {transform_indices = @transform_1, window_bounds = array<i64: 16, 128>}, {transform_indices = @transform_2, window_bounds = array<i64: 1, 16, 128>}]} {
    %c0_i32 = arith.constant 0 : i32
    %0 = arith.cmpi eq, %arg1, %c0_i32 : i32
    %1 = arith.extui %0 : i1 to i32
    %c0_i32_0 = arith.constant 0 : i32
    %2 = arith.cmpi ne, %1, %c0_i32_0 : i32
    scf.if %2 {
      %cst_12 = arith.constant 0.000000e+00 : f32
      %19 = vector.broadcast %cst_12 : f32 to vector<16x128xf32>
      %c0_13 = arith.constant 0 : index
      %c0_14 = arith.constant 0 : index
      %c0_15 = arith.constant 0 : index
      %20 = vector.load %arg4[%c0_13, %c0_14, %c0_15] : memref<1x16x128xf32, #tpu.memory_space<vmem>>, vector<1x16x128xf32>
      %21 = vector.shape_cast %20 : vector<1x16x128xf32> to vector<16x128xf32>
      %22 = vector.shape_cast %19 : vector<16x128xf32> to vector<1x16x128xf32>
      tpu.vector_store %arg4[%c0_13, %c0_14, %c0_15], %22 {strides = array<i32>} : memref<1x16x128xf32, #tpu.memory_space<vmem>>, vector<1x16x128xf32>,
    } else {
    }
    %c0 = arith.constant 0 : index
    %c0_1 = arith.constant 0 : index
    %c0_2 = arith.constant 0 : index
    %3 = vector.load %arg4[%c0, %c0_1, %c0_2] : memref<1x16x128xf32, #tpu.memory_space<vmem>>, vector<1x16x128xf32>
    %4 = vector.shape_cast %3 : vector<1x16x128xf32> to vector<16x128xf32>
    %c0_3 = arith.constant 0 : index
    %c0_4 = arith.constant 0 : index
    %5 = vector.load %arg2[%c0_3, %c0_4] : memref<16x128xf32, #tpu.memory_space<vmem>>, vector<16x128xf32>
    %c0_5 = arith.constant 0 : index
    %c0_6 = arith.constant 0 : index
    %6 = vector.load %arg3[%c0_5, %c0_6] : memref<16x128xf32, #tpu.memory_space<vmem>>, vector<16x128xf32>
    %cst = arith.constant 4.000000e-01 : f32
    %7 = vector.broadcast %cst : f32 to vector<16x128xf32>
    %8 = arith.mulf %6, %7 : vector<16x128xf32>
    %cst_7 = arith.constant 1.000000e+00 : f32
    %9 = vector.broadcast %cst_7 : f32 to vector<16x128xf32>
    %10 = arith.addf %8, %9 : vector<16x128xf32>
    %11 = arith.subf %5, %10 : vector<16x128xf32>
    %12 = math.absf %11 : vector<16x128xf32>
    %13 = vector.shape_cast %12 : vector<16x128xf32> to vector<1x16x128xf32>
    %cst_8 = arith.constant dense<0.000000e+00> : vector<16x128xf32>
    %14 = vector.multi_reduction <add>, %13, %cst_8 [0] : vector<1x16x128xf32> to vector<16x128xf32>
    %15 = arith.addf %4, %14 : vector<16x128xf32>
    %c0_9 = arith.constant 0 : index
    %c0_10 = arith.constant 0 : index
    %c0_11 = arith.constant 0 : index
    %16 = vector.load %arg4[%c0_9, %c0_10, %c0_11] : memref<1x16x128xf32, #tpu.memory_space<vmem>>, vector<1x16x128xf32>
    %17 = vector.shape_cast %16 : vector<1x16x128xf32> to vector<16x128xf32>
    %18 = vector.shape_cast %15 : vector<16x128xf32> to vector<1x16x128xf32>
    tpu.vector_store %arg4[%c0_9, %c0_10, %c0_11], %18 {strides = array<i32>} : memref<1x16x128xf32, #tpu.memory_space<vmem>>, vector<1x16x128xf32>,
    return
  }
  func.func @transform_0(%arg0: i32, %arg1: i32) -> (i32, i32) {
    %c1_i32 = arith.constant 1 : i32
    %0 = arith.muli %arg0, %c1_i32 : i32
    %1 = arith.addi %0, %arg1 : i32
    %c0_i32 = arith.constant 0 : i32
    %2 = arith.minsi %1, %c0_i32 : i32
    %c0_i32_0 = arith.constant 0 : i32
    %c0_i32_1 = arith.constant 0 : i32
    return %2, %c0_i32_0 : i32, i32
  }
  func.func @transform_1(%arg0: i32, %arg1: i32) -> (i32, i32) {
    %c1_i32 = arith.constant 1 : i32
    %0 = arith.muli %arg0, %c1_i32 : i32
    %1 = arith.addi %0, %arg1 : i32
    %c0_i32 = arith.constant 0 : i32
    %2 = arith.minsi %1, %c0_i32 : i32
    %c0_i32_0 = arith.constant 0 : i32
    %c0_i32_1 = arith.constant 0 : i32
    return %2, %c0_i32_0 : i32, i32
  }
  func.func @transform_2(%arg0: i32, %arg1: i32) -> (i32, i32, i32) {
    %c0_i32 = arith.constant 0 : i32
    %c0_i32_0 = arith.constant 0 : i32
    %c0_i32_1 = arith.constant 0 : i32
    return %arg0, %c0_i32, %c0_i32_0 : i32, i32, i32
  }
}

</mosaic_0001>

<llo_original>
// kernel: tpu_custom_call.1
$region0: #{tpu_custom_call.1}
  #allocation0 [shape = 'u32[]', space=smem, size = 0x4, offset = 0x4, fixed_abs, tag = 'smem constant byte address 0x4 - core index']
  #allocation1 [shape = 'u32[144,128]{1,0:T(1,128)}', space=vmem, size = 0x12000, scoped, tag = 'internal scratch']
  %s0 = inlined_call_operand.hbm [shape: f32[16,128], index: 0, kind: input, shape index: {}]
  %s1 = inlined_call_operand.hbm [shape: f32[16,128], index: 1, kind: input, shape index: {}]
  %s2 = inlined_call_operand.hbm [shape: f32[1,16,128], index: 2, kind: output, shape index: {}]
  %s3 = sld [smem:[#allocation0]]
  $region30: #{tpu_custom_call.1} parent=0
    _
  %s5 = ssub.s32 1, %s3
  %s6 = scalar_select 0, %s5, %s3
  $region1: #{tpu_custom_call.1} parent=0
    #allocation2 [shape = 'u8[8192]{0}', space=vmem, size = 0x2000, scoped, tag = 'input window, operand 0, single buffered']
    #allocation3 [shape = 's32[1]{0}', space=sflag, size = 0x4, scoped, tag = 'scoped memory for tpu_custom_call.1']
    #allocation4 [shape = 's32[1]{0}', space=sflag, size = 0x4, scoped, tag = 'scoped memory for tpu_custom_call.1']
    #allocation5 [shape = 'u8[8192]{0}', space=vmem, size = 0x2000, scoped, tag = 'input window, operand 1, single buffered']
    #allocation6 [shape = 's32[1]{0}', space=sflag, size = 0x4, scoped, tag = 'scoped memory for tpu_custom_call.1']
    #allocation7 [shape = 'u8[8192]{0}', space=vmem, size = 0x2000, scoped, tag = 'output window, operand 0, single buffered']
    %7 = vsyncpa [#allocation3], 0
    %8 = vsyncpa [#allocation6], 0
    %9 = vsyncpa [#allocation4], 0
    // Predicated region
    $region2: #{tpu_custom_call.1} parent=1 // pred_check
      _
    $region3: #{tpu_custom_call.1} parent=1 // pred_check_branch
      %11 = sbr.rel (0) target = $region5
    $region4: #{tpu_custom_call.1} parent=1 // pred_region
      %s12 = sadd.s32 0, 0
      %p13 = scmp.lt.s32.totalorder %s12, 0
      %s14 = scalar_select %p13, %s12, 0
      %s15 = smul.u32 2, %s14
      %s17 = ssub.s32 256, 256
      %18 = vsyncadd [#allocation3], %s17
      %s19 = smul.addr %s15, 128
      %s20 = scalar_lea.hbm %s0, %s19
      %s21 = sshll.u32 [#allocation2], 4
      %s22 = int_to_ptr.vmem [resolvable:$true] %s21
      %27 = dma.hbm_to_vmem [thread:$0]  %s20, 256, %s22, [#allocation3], 128, 128, 8
    $region5: #{tpu_custom_call.1} parent=1 // pred_fallthru
      _
    // Predicated region
    $region6: #{tpu_custom_call.1} parent=1 // pred_check
      _
    $region7: #{tpu_custom_call.1} parent=1 // pred_check_branch
      %29 = sbr.rel (0) target = $region9
    $region8: #{tpu_custom_call.1} parent=1 // pred_region
      %s30 = sadd.s32 0, 0
      %p31 = scmp.lt.s32.totalorder %s30, 0
      %s32 = scalar_select %p31, %s30, 0
      %s33 = smul.u32 2, %s32
      %s35 = ssub.s32 256, 256
      %36 = vsyncadd [#allocation6], %s35
      %s37 = smul.addr %s33, 128
      %s38 = scalar_lea.hbm %s1, %s37
      %s39 = sshll.u32 [#allocation5], 4
      %s40 = int_to_ptr.vmem [resolvable:$true] %s39
      %45 = dma.hbm_to_vmem [thread:$0]  %s38, 256, %s40, [#allocation6], 128, 128, 8
    $region9: #{tpu_custom_call.1} parent=1 // pred_fallthru
      _
    // Predicated region
    $region10: #{tpu_custom_call.1} parent=1 // pred_check
      _
    $region11: #{tpu_custom_call.1} parent=1 // pred_check_branch
      %47 = sbr.rel (0) target = $region13
    $region12: #{tpu_custom_call.1} parent=1 // pred_region
      %48 = dma.done [#allocation3], 256
    $region13: #{tpu_custom_call.1} parent=1 // pred_fallthru
      _
    // Predicated region
    $region14: #{tpu_custom_call.1} parent=1 // pred_check
      _
    $region15: #{tpu_custom_call.1} parent=1 // pred_check_branch
      %50 = sbr.rel (0) target = $region17
    $region16: #{tpu_custom_call.1} parent=1 // pred_region
      %51 = dma.done [#allocation6], 256
    $region17: #{tpu_custom_call.1} parent=1 // pred_fallthru
      _
    %s52 = sadd.s32 0, 0
    %p53 = scmp.lt.s32.totalorder %s52, 0
    %s54 = scalar_select %p53, %s52, 0
    %s55 = smul.u32 2, %s54
    %s56 = sadd.s32 0, 0
    %p57 = scmp.lt.s32.totalorder %s56, 0
    %s58 = scalar_select %p57, %s56, 0
    %s59 = smul.u32 2, %s58
    %p60 = scmp.eq.s32.totalorder 0, 0
    // Predicated region
    $region18: #{tpu_custom_call.1} parent=1 // pred_check
      %p61 = pneg %p60
    $region19: #{tpu_custom_call.1} parent=1 // pred_check_branch
      %63 = sbr.rel (%p61) target = $region21
    $region20: #{tpu_custom_call.1} parent=1 // pred_region
      %64 = vst [vmem:[#allocation7] sm:$0xff] 0.0
      %65 = vst [vmem:[#allocation7 + $0x8] sm:$0xff] 0.0
    $region21: #{tpu_custom_call.1} parent=1 // pred_fallthru
      _
    %v66 = vld [vmem:[#allocation7] sm:$0xff]
    %v67 = vld [vmem:[#allocation7 + $0x8] sm:$0xff]
    %v68 = vld [vmem:[#allocation2] sm:$0xff]
    %v69 = vld [vmem:[#allocation2 + $0x8] sm:$0xff]
    %v70 = vld [vmem:[#allocation5] sm:$0xff]
    %v71 = vld [vmem:[#allocation5 + $0x8] sm:$0xff]
    %v72 = vmul.f32 %v70, 0.4
    %v73 = vmul.f32 %v71, 0.4
    %v74 = vadd.f32 %v72, 1.0
    %v75 = vadd.f32 %v73, 1.0
    %v76 = vsub.f32 %v68, %v74
    %v77 = vsub.f32 %v69, %v75
    %v78 = vand.u32 2147483647, %v76
    %v79 = vand.u32 2147483647, %v77
    %v80 = vadd.f32 %v78, 0.0
    %v81 = vadd.f32 %v79, 0.0
    %v82 = vadd.f32 %v66, %v80
    %v83 = vadd.f32 %v67, %v81
    %84 = vst [vmem:[#allocation7] sm:$0xff] %v82
    %85 = vst [vmem:[#allocation7 + $0x8] sm:$0xff] %v83
    // Predicated region
    $region22: #{tpu_custom_call.1} parent=1 // pred_check
      _
    $region23: #{tpu_custom_call.1} parent=1 // pred_check_branch
      %87 = sbr.rel (0) target = $region25
    $region24: #{tpu_custom_call.1} parent=1 // pred_region
      %s89 = ssub.s32 256, 256
      %90 = vsyncadd [#allocation4], %s89
      %s91 = sshll.u32 [#allocation7], 4
      %s92 = int_to_ptr.vmem [resolvable:$true] %s91
      %97 = dma.vmem_to_hbm [thread:$0]  %s92, 256, %s2, [#allocation4], 128, 128, 8
    $region25: #{tpu_custom_call.1} parent=1 // pred_fallthru
      _
    // Predicated region
    $region26: #{tpu_custom_call.1} parent=1 // pred_check
      _
    $region27: #{tpu_custom_call.1} parent=1 // pred_check_branch
      %99 = sbr.rel (0) target = $region29
    $region28: #{tpu_custom_call.1} parent=1 // pred_region
      %100 = dma.done [#allocation4], 256
    $region29: #{tpu_custom_call.1} parent=1 // pred_fallthru
      _
    %101 = vsyncpa [#allocation3], 1
    %102 = vsyncpa [#allocation6], 1
    %103 = vsyncpa [#allocation4], 1

</llo_original>
